<compile_context>
chip_gen: v7x
topology: tpu7x:2x2x1
jax: 0.10.0
libtpu: 0.0.40
codegen_flags: <defaults>
</compile_context>

<pallas_src>
import functools

import jax
import jax.numpy as jnp
from jax.experimental import pallas as pl
from jax.experimental.pallas import tpu as pltpu

_MiB = 1024 * 1024
_NEG_INF = -1e30


# --------------------------------------------------------------------------- #
# Pass 1: per-node projection (runs once per node, not once per row tile).
# --------------------------------------------------------------------------- #
def _proj_kernel(x_ref, w_ref, adst_ref, asrc_ref, h_ref, sdst_ref, ssrc_ref):
    """H = X @ W_all (all heads in one wide MXU matmul) plus per-head attention
    scores s_dst / s_src, batched into two small MXU matmuls via block-diagonal
    attention matrices."""
    x_bf = x_ref[...].astype(jnp.bfloat16)
    w_bf = w_ref[...].astype(jnp.bfloat16)
    h = jnp.dot(x_bf, w_bf, preferred_element_type=jnp.float32)       # (tm, HD)
    h_bf = h.astype(jnp.bfloat16)
    sdst_ref[...] = jnp.dot(h_bf, adst_ref[...].astype(jnp.bfloat16),
                            preferred_element_type=jnp.float32)       # (tm, heads)
    ssrc_ref[...] = jnp.dot(h_bf, asrc_ref[...].astype(jnp.bfloat16),
                            preferred_element_type=jnp.float32)       # (tm, heads)
    h_ref[...] = h_bf                                                  # bf16 out


# --------------------------------------------------------------------------- #
# Pass 2: masked, edge-weighted softmax attention + neighbor aggregation.
# --------------------------------------------------------------------------- #
def _attn_kernel(*refs, heads, head_dim, leaky_slope, apply_relu,
                 reduce_mean, apply_log_softmax, has_mask):
    if has_mask:
        h_ref, sdst_ref, ssrcT_ref, aw_ref, mask_ref, out_ref = refs
    else:
        h_ref, sdst_ref, ssrcT_ref, aw_ref, out_ref = refs
        mask_ref = None

    aw = aw_ref[...].astype(jnp.float32)            # (tm, N): bf16 stream, upcast once
    neg_bias = jnp.where(aw > 0.0, 0.0, _NEG_INF)   # edge mask, hoisted out of head loop
    sdst = sdst_ref[...]                            # (tm, heads) f32
    ssrcT = ssrcT_ref[...]                          # (heads, N) f32
    h_all = h_ref[...]                              # (N, heads*D) bf16, resident

    acc = None
    for h in range(heads):
        lo = h * head_dim
        # e[i, j] = LeakyReLU(a_dst . h_i + a_src . h_j), masked to edges.
        e = sdst[:, h:h + 1] + ssrcT[h:h + 1, :]                     # (tm, N)
        e = jnp.where(e > 0, e, leaky_slope * e)
        e = e + neg_bias
        m = jnp.max(e, axis=-1, keepdims=True)
        p = jnp.exp(e - m) * aw                     # aw==0 already kills non-edges
        denom = jnp.sum(p, axis=-1, keepdims=True) + 1e-16
        # Aggregate with unnormalized weights; normalize on the (tm, D) result.
        out_raw = jnp.dot(p.astype(jnp.bfloat16), h_all[:, lo:lo + head_dim],
                          preferred_element_type=jnp.float32)        # (tm, D)
        out_h = out_raw * (1.0 / denom)
        if reduce_mean:
            acc = out_h if acc is None else acc + out_h
        else:
            # Write each head's slice directly (no concatenate, bounded live ranges).
            out_ref[:, lo:lo + head_dim] = out_h.astype(out_ref.dtype)

    need_epilogue = reduce_mean or apply_relu or (mask_ref is not None) or apply_log_softmax
    if not need_epilogue:
        return

    if reduce_mean:
        slab = acc * (1.0 / heads)                                   # (tm, D)
    else:
        slab = out_ref[...]                                          # assembled (tm, HD)

    if apply_relu:
        slab = jnp.maximum(slab, 0.0)
    if mask_ref is not None:
        slab = slab * mask_ref[...]                                  # fused dropout
    if apply_log_softmax:
        mx = jnp.max(slab, axis=-1, keepdims=True)
        z = slab - mx
        slab = z - jnp.log(jnp.sum(jnp.exp(z), axis=-1, keepdims=True))

    out_ref[...] = slab.astype(out_ref.dtype)


# --------------------------------------------------------------------------- #
# VMEM-aware tiling.
# --------------------------------------------------------------------------- #
def _attn_vmem_bytes(tm, n, heads, hd, out_dim, has_mask):
    resident = 2 * (n * hd * 2 + heads * n * 4)          # H (bf16) + s_src^T (f32), 2 bufs
    streamed = 2 * (tm * n * 2 + tm * heads * 4 + tm * out_dim * 4)
    if has_mask:
        streamed += 2 * tm * out_dim * 4
    temps = 6 * tm * n * 4                               # aw_f32 / neg_bias / e / p + slack
    return resident + streamed + temps


def _pick_row_tile(n, heads, hd, out_dim, has_mask, budget=48 * _MiB):
    # Largest row tile whose working set fits the per-core VMEM budget
    # (conservative for v7x's 64 MiB per-TC VMEM; comfortable on v5e/v6e).
    for tm in (1024, 512, 256, 128, 64, 32, 16, 8):
        if n % tm == 0 and _attn_vmem_bytes(tm, n, heads, hd, out_dim, has_mask) <= budget:
            return tm
    return 8


# --------------------------------------------------------------------------- #
# One GAT layer = projection pallas_call + attention pallas_call.
# --------------------------------------------------------------------------- #
def gat_conv(x, aw_bf, wt, att_src, att_dst, *, dropout_mask=None, row_tile=None,
             apply_relu=False, reduce_mean=False, apply_log_softmax=False):
    heads, F, D = wt.shape
    N = x.shape[0]
    HD = heads * D
    assert N % 8 == 0, "N must be a multiple of 8 (sublane tiling)"
    out_dim = D if reduce_mean else HD
    has_mask = dropout_mask is not None

    # Stack per-head weights into one lane-dense (F, heads*D) MXU operand, and
    # block-diagonal attention matrices so all heads' scores come out of a
    # single MXU call each.
    w_all = jnp.transpose(wt, (1, 0, 2)).reshape(F, HD)
    eyeh = jnp.eye(heads, dtype=jnp.float32)
    adst_mat = (att_dst[:, 0, :, None] * eyeh[:, None, :]).reshape(HD, heads)
    asrc_mat = (att_src[:, 0, :, None] * eyeh[:, None, :]).reshape(HD, heads)

    tm = row_tile if row_tile is not None else _pick_row_tile(N, heads, HD, out_dim, has_mask)
    assert N % tm == 0 and tm % 8 == 0, "row tile must divide N and be a multiple of 8"
    grid = (N // tm,)
    vmem_cap = int(min(64 * _MiB,
                       max(32 * _MiB,
                           1.5 * _attn_vmem_bytes(tm, N, heads, HD, out_dim, has_mask))))
    cparams = pltpu.CompilerParams(dimension_semantics=("parallel",),
                                   vmem_limit_bytes=vmem_cap)

    # ---- pass 1: projection -------------------------------------------------
    h_bf, sdst, ssrc = pl.pallas_call(
        _proj_kernel,
        out_shape=(jax.ShapeDtypeStruct((N, HD), jnp.bfloat16),
                   jax.ShapeDtypeStruct((N, heads), jnp.float32),
                   jax.ShapeDtypeStruct((N, heads), jnp.float32)),
        grid=grid,
        in_specs=[pl.BlockSpec((tm, F), lambda i: (i, 0)),
                  pl.BlockSpec((F, HD), lambda i: (0, 0)),
                  pl.BlockSpec((HD, heads), lambda i: (0, 0)),
                  pl.BlockSpec((HD, heads), lambda i: (0, 0))],
        out_specs=(pl.BlockSpec((tm, HD), lambda i: (i, 0)),
                   pl.BlockSpec((tm, heads), lambda i: (i, 0)),
                   pl.BlockSpec((tm, heads), lambda i: (i, 0))),
        compiler_params=cparams,
    )(x, w_all, adst_mat, asrc_mat)

    ssrc_t = ssrc.T            # (heads, N): row layout the kernel broadcasts from

    # ---- pass 2: attention + aggregation ------------------------------------
    kernel = functools.partial(
        _attn_kernel, heads=heads, head_dim=D, leaky_slope=0.2,
        apply_relu=apply_relu, reduce_mean=reduce_mean,
        apply_log_softmax=apply_log_softmax, has_mask=has_mask)

    inputs = [h_bf, sdst, ssrc_t, aw_bf]
    in_specs = [
        pl.BlockSpec((N, HD), lambda i: (0, 0)),       # H, all source nodes (bf16)
        pl.BlockSpec((tm, heads), lambda i: (i, 0)),   # dest scores for this tile
        pl.BlockSpec((heads, N), lambda i: (0, 0)),    # src scores, all nodes
        pl.BlockSpec((tm, N), lambda i: (i, 0)),       # A*W row tile (bf16)
    ]
    if has_mask:
        inputs.append(dropout_mask)
        in_specs.append(pl.BlockSpec((tm, out_dim), lambda i: (i, 0)))

    return pl.pallas_call(
        kernel,
        out_shape=jax.ShapeDtypeStruct((N, out_dim), jnp.float32),
        grid=grid,
        in_specs=in_specs,
        out_specs=pl.BlockSpec((tm, out_dim), lambda i: (i, 0)),
        compiler_params=cparams,
    )(*inputs)


# --------------------------------------------------------------------------- #
# Model wrapper (matches the PyTorch GAT forward).
# --------------------------------------------------------------------------- #
def init_params(key, input_dim, hidden_dim, output_dim, heads):
    ks = jax.random.split(key, 6)

    def glorot(k, shape):
        fan_in, fan_out = shape[-2], shape[-1]
        scale = jnp.sqrt(2.0 / (fan_in + fan_out))
        return scale * jax.random.normal(k, shape, dtype=jnp.float32)

    return {
        # layer 1: GATConv(input_dim, hidden_dim, heads), concat=True
        "wt1":   glorot(ks[0], (heads, input_dim, hidden_dim)),
        "asrc1": glorot(ks[1], (heads, 1, hidden_dim)),
        "adst1": glorot(ks[2], (heads, 1, hidden_dim)),
        # layer 2: GATConv(heads*hidden_dim, output_dim, concat=False) -> head mean
        "wt2":   glorot(ks[3], (heads, heads * hidden_dim, output_dim)),
        "asrc2": glorot(ks[4], (heads, 1, output_dim)),
        "adst2": glorot(ks[5], (heads, 1, output_dim)),
    }


def gat_forward(params, X, A, W, *, dropout=0.5, dropout_training=True,
                dropout_key=None, row_tile=None):
    if dropout_key is None:
        dropout_key = jax.random.PRNGKey(42)
    N = X.shape[0]
    heads, _, hidden = params["wt1"].shape

    # Merge adjacency and edge weights into one dense bf16 stream: A*W is the
    # only O(N^2) operand, so bf16 halves HBM traffic and the double-buffered
    # (tm, N) VMEM footprint.  Assumes W > 0 on real edges.
    aw = (A * W).astype(jnp.bfloat16)

    # Inverted-dropout keep mask (scaled), fused into the layer-1 kernel epilogue.
    mask = None
    if dropout > 0.0 and dropout_training:
        keep = jax.random.bernoulli(dropout_key, 1.0 - dropout, (N, heads * hidden))
        mask = keep.astype(jnp.float32) / (1.0 - dropout)

    # Layer 1: all heads fused, concat + ReLU + dropout in-kernel.
    h = gat_conv(X, aw, params["wt1"], params["asrc1"], params["adst1"],
                 dropout_mask=mask, row_tile=row_tile,
                 apply_relu=True, reduce_mean=False)

    # Layer 2: concat=False -> head mean, with log_softmax fused in-kernel.
    z = gat_conv(h, aw, params["wt2"], params["asrc2"], params["adst2"],
                 dropout_mask=None, row_tile=row_tile,
                 apply_relu=False, reduce_mean=True, apply_log_softmax=True)
    return z


if __name__ == "__main__":
    N = 16            # nodes
    input_dim = 8
    hidden_dim = 8
    output_dim = 4
    heads = 8

    key = jax.random.PRNGKey(0)
    k_param, k_x, k_a, k_w, k_drop = jax.random.split(key, 5)

    params = init_params(k_param, input_dim, hidden_dim, output_dim, heads)

    X = jax.random.normal(k_x, (N, input_dim), dtype=jnp.float32)
    # adjacency with self loops so every node has at least one neighbor
    A = (jax.random.uniform(k_a, (N, N)) < 0.3).astype(jnp.float32)
    A = jnp.maximum(A, jnp.eye(N, dtype=jnp.float32))
    # positive dense edge weights
    W = jax.random.uniform(k_w, (N, N), dtype=jnp.float32, minval=0.1, maxval=1.0)

    # row_tile=8 exercises the multi-tile (grid=(2,)) row-tiled path at this size.
    out = gat_forward(params, X, A, W, dropout=0.5, dropout_training=True,
                      dropout_key=k_drop, row_tile=8)
    out = jax.block_until_ready(out)

    assert out.shape == (N, output_dim)
    assert bool(jnp.all(jnp.isfinite(out)))
    print("KERNEL_OK")
</pallas_src>

<mosaic_0001>
module attributes {stable_mosaic.version = 11 : i64} {
  func.func @_proj_kernel(%arg0: i32, %arg1: memref<8x8xf32, #tpu.memory_space<vmem>>, %arg2: memref<8x64xf32, #tpu.memory_space<vmem>>, %arg3: memref<64x8xf32, #tpu.memory_space<vmem>>, %arg4: memref<64x8xf32, #tpu.memory_space<vmem>>, %arg5: memref<8x64xbf16, #tpu.memory_space<vmem>>, %arg6: memref<8x8xf32, #tpu.memory_space<vmem>>, %arg7: memref<8x8xf32, #tpu.memory_space<vmem>>) attributes {dimension_semantics = [#tpu.dimension_semantics<parallel>], iteration_bounds = array<i64: 2>, scalar_prefetch = 0 : i64, scratch_operands = 0 : i64, tpu.core_type = #tpu.core_type<tc>, window_params = [{transform_indices = @transform_0, window_bounds = array<i64: 8, 8>}, {pipeline_mode = #tpu.pipeline_mode<synchronous>, transform_indices = @transform_1, window_bounds = array<i64: 8, 64>}, {pipeline_mode = #tpu.pipeline_mode<synchronous>, transform_indices = @transform_2, window_bounds = array<i64: 64, 8>}, {pipeline_mode = #tpu.pipeline_mode<synchronous>, transform_indices = @transform_3, window_bounds = array<i64: 64, 8>}, {transform_indices = @transform_4, window_bounds = array<i64: 8, 64>}, {transform_indices = @transform_5, window_bounds = array<i64: 8, 8>}, {transform_indices = @transform_6, window_bounds = array<i64: 8, 8>}]} {
    %c0 = arith.constant 0 : index
    %c0_0 = arith.constant 0 : index
    %0 = vector.load %arg1[%c0, %c0_0] : memref<8x8xf32, #tpu.memory_space<vmem>>, vector<8x8xf32>
    %1 = arith.truncf %0 : vector<8x8xf32> to vector<8x8xbf16>
    %c0_1 = arith.constant 0 : index
    %c0_2 = arith.constant 0 : index
    %2 = vector.load %arg2[%c0_1, %c0_2] : memref<8x64xf32, #tpu.memory_space<vmem>>, vector<8x64xf32>
    %3 = arith.truncf %2 : vector<8x64xf32> to vector<8x64xbf16>
    %cst = arith.constant dense<0.000000e+00> : vector<8x64xf32>
    %4 = tpu.matmul %1, %3, %cst {dimension_numbers = #tpu.dot_dimension_numbers<[1], [0], [0], [1], [0, 0, 1, 1], [], []>} : vector<8x8xbf16>, vector<8x64xbf16>, vector<8x64xf32> -> vector<8x64xf32>
    %5 = arith.truncf %4 : vector<8x64xf32> to vector<8x64xbf16>
    %c0_3 = arith.constant 0 : index
    %c0_4 = arith.constant 0 : index
    %6 = vector.load %arg3[%c0_3, %c0_4] : memref<64x8xf32, #tpu.memory_space<vmem>>, vector<64x8xf32>
    %7 = arith.truncf %6 : vector<64x8xf32> to vector<64x8xbf16>
    %cst_5 = arith.constant dense<0.000000e+00> : vector<8x8xf32>
    %8 = tpu.matmul %5, %7, %cst_5 {dimension_numbers = #tpu.dot_dimension_numbers<[1], [0], [0], [1], [0, 0, 1, 1], [], []>} : vector<8x64xbf16>, vector<64x8xbf16>, vector<8x8xf32> -> vector<8x8xf32>
    %c0_6 = arith.constant 0 : index
    %c0_7 = arith.constant 0 : index
    %9 = vector.load %arg6[%c0_6, %c0_7] : memref<8x8xf32, #tpu.memory_space<vmem>>, vector<8x8xf32>
    tpu.vector_store %arg6[%c0_6, %c0_7], %8 {strides = array<i32>} : memref<8x8xf32, #tpu.memory_space<vmem>>, vector<8x8xf32>,
    %c0_8 = arith.constant 0 : index
    %c0_9 = arith.constant 0 : index
    %10 = vector.load %arg4[%c0_8, %c0_9] : memref<64x8xf32, #tpu.memory_space<vmem>>, vector<64x8xf32>
    %11 = arith.truncf %10 : vector<64x8xf32> to vector<64x8xbf16>
    %cst_10 = arith.constant dense<0.000000e+00> : vector<8x8xf32>
    %12 = tpu.matmul %5, %11, %cst_10 {dimension_numbers = #tpu.dot_dimension_numbers<[1], [0], [0], [1], [0, 0, 1, 1], [], []>} : vector<8x64xbf16>, vector<64x8xbf16>, vector<8x8xf32> -> vector<8x8xf32>
    %c0_11 = arith.constant 0 : index
    %c0_12 = arith.constant 0 : index
    %13 = vector.load %arg7[%c0_11, %c0_12] : memref<8x8xf32, #tpu.memory_space<vmem>>, vector<8x8xf32>
    tpu.vector_store %arg7[%c0_11, %c0_12], %12 {strides = array<i32>} : memref<8x8xf32, #tpu.memory_space<vmem>>, vector<8x8xf32>,
    %c0_13 = arith.constant 0 : index
    %c0_14 = arith.constant 0 : index
    %14 = vector.load %arg5[%c0_13, %c0_14] : memref<8x64xbf16, #tpu.memory_space<vmem>>, vector<8x64xbf16>
    tpu.vector_store %arg5[%c0_13, %c0_14], %5 {strides = array<i32>} : memref<8x64xbf16, #tpu.memory_space<vmem>>, vector<8x64xbf16>,
    return
  }
  func.func @transform_0(%arg0: i32) -> (i32, i32) {
    %c0_i32 = arith.constant 0 : i32
    %c0_i32_0 = arith.constant 0 : i32
    return %arg0, %c0_i32 : i32, i32
  }
  func.func @transform_1(%arg0: i32) -> (i32, i32) {
    %c0_i32 = arith.constant 0 : i32
    %c0_i32_0 = arith.constant 0 : i32
    %c0_i32_1 = arith.constant 0 : i32
    return %c0_i32, %c0_i32_0 : i32, i32
  }
  func.func @transform_2(%arg0: i32) -> (i32, i32) {
    %c0_i32 = arith.constant 0 : i32
    %c0_i32_0 = arith.constant 0 : i32
    %c0_i32_1 = arith.constant 0 : i32
    return %c0_i32, %c0_i32_0 : i32, i32
  }
  func.func @transform_3(%arg0: i32) -> (i32, i32) {
    %c0_i32 = arith.constant 0 : i32
    %c0_i32_0 = arith.constant 0 : i32
    %c0_i32_1 = arith.constant 0 : i32
    return %c0_i32, %c0_i32_0 : i32, i32
  }
  func.func @transform_4(%arg0: i32) -> (i32, i32) {
    %c0_i32 = arith.constant 0 : i32
    %c0_i32_0 = arith.constant 0 : i32
    return %arg0, %c0_i32 : i32, i32
  }
  func.func @transform_5(%arg0: i32) -> (i32, i32) {
    %c0_i32 = arith.constant 0 : i32
    %c0_i32_0 = arith.constant 0 : i32
    return %arg0, %c0_i32 : i32, i32
  }
  func.func @transform_6(%arg0: i32) -> (i32, i32) {
    %c0_i32 = arith.constant 0 : i32
    %c0_i32_0 = arith.constant 0 : i32
    return %arg0, %c0_i32 : i32, i32
  }
}

</mosaic_0001>

<llo_original>
// kernel: tpu_custom_call.1
$region0: #{tpu_custom_call.1}
  #allocation0 [shape = 'u32[]', space=smem, size = 0x4, offset = 0x4, fixed_abs, tag = 'smem constant byte address 0x4 - core index']
  #allocation1 [shape = 'u32[144,128]{1,0:T(1,128)}', space=vmem, size = 0x12000, scoped, tag = 'internal scratch']
  %s0 = inlined_call_operand.vmem [shape: f32[16,8], index: 0, kind: input, shape index: {}]
  %s1 = inlined_call_operand.vmem [shape: f32[8,64], index: 1, kind: input, shape index: {}]
  %s2 = inlined_call_operand.vmem [shape: f32[64,8], index: 2, kind: input, shape index: {}]
  %s3 = inlined_call_operand.vmem [shape: f32[64,8], index: 3, kind: input, shape index: {}]
  %s4 = inlined_call_operand.hbm [shape: bf16[16,64], index: 4, kind: output, shape index: {0}]
  %s5 = inlined_call_operand.vmem [shape: f32[16,8], index: 5, kind: output, shape index: {1}]
  %s6 = inlined_call_operand.vmem [shape: f32[16,8], index: 6, kind: output, shape index: {2}]
  %7 = xla_tuple %s4, %s5, %s6
  %s8 = sld [smem:[#allocation0]]
  $region65: #{tpu_custom_call.1} parent=0
    _
  %s10 = ssub.s32 1, %s8
  %s11 = scalar_select 0, %s10, %s8
  $region1: #{tpu_custom_call.1} parent=0
    #allocation2 [shape = 'u8[4096]{0}', space=vmem, size = 0x1000, scoped, tag = 'output window, operand 0']
    #allocation3 [shape = 's32[2]{0}', space=sflag, size = 0x8, scoped, tag = 'scoped memory for tpu_custom_call.1']
    %12 = vsyncpa [#allocation3], 0
    %s13 = scalar_lea.sflag [#allocation3], 1
    %14 = vsyncpa %s13, 0
    loop: start=0, step=1, limit=4
    $region2: #{tpu_custom_call.1} parent=1 // loop_pre_header
      _
    $region3: #{tpu_custom_call.1} parent=1 // loop_header
      %s16 = sphi 0, %s20
      %p17 = scmp.ge.s32.totalorder %s16, 4
      %s26 = sphi 0, %s28
      %s29 = sphi 0, %s26
      %s30 = sphi 0, %s29
      %s46 = sphi 0, %s30
      %s50 = sphi 0, %s50
      %s52 = sphi 0, %s50
      %s53 = sphi 0, %s52
      %s67 = sphi 0, %s53
      %s71 = sphi 0, %s71
      %s73 = sphi 0, %s71
      %s74 = sphi 0, %s73
      %s88 = sphi 0, %s74
      %s92 = sphi 0, %s92
      %s94 = sphi 0, %s92
      %s95 = sphi 0, %s94
      %s109 = sphi 0, %s95
      %s115 = sphi 0, %s117
      %s118 = sphi 0, %s115
      %s119 = sphi 0, %s118
      %s135 = sphi 0, %s119
      %s141 = sphi 0, %s143
      %s144 = sphi 0, %s141
      %s145 = sphi 0, %s144
      %s161 = sphi 0, %s145
      %s167 = sphi 0, %s169
      %s170 = sphi 0, %s167
      %s171 = sphi 0, %s170
      %s187 = sphi 0, %s171
    $region4: #{tpu_custom_call.1} parent=1 // loop_header_branch
      %19 = sbr.rel (%p17) target = $region8
    $region5: #{tpu_custom_call.1} parent=1 // loop_body
      %s21 = ssub.s32 %s16, 1
      %s22 = ssub.s32 %s16, 2
      %s23 = sadd.s32 %s16, 1
      %s24 = ssub.s32 %s16, %s23
      %p25 = scmp.eq.s32.totalorder %s24, 0
      %s27 = sadd.s32 %s26, 1
      %s28 = scalar_select %p25, %s26, %s27
      %p31 = pneg %p25
      %p32 = scmp.eq.s32.totalorder %s16, 1
      %p33 = por %p31, %p32
      %p34 = scmp.ne.s32.totalorder %s26, %s29
      %p35 = scmp.eq.s32.totalorder %s16, 0
      %p36 = por %p34, %p35
      %p37 = scmp.ne.s32.totalorder %s26, %s29
      %p38 = scmp.eq.s32.totalorder %s21, 1
      %p39 = por %p37, %p38
      %p40 = scmp.ne.s32.totalorder %s29, %s30
      %p41 = scmp.eq.s32.totalorder %s21, 0
      %p42 = por %p40, %p41
      %p43 = scmp.ne.s32.totalorder %s29, %s30
      %p44 = scmp.eq.s32.totalorder %s22, 1
      %p45 = por %p43, %p44
      %p47 = scmp.ne.s32.totalorder %s30, %s46
      %p48 = scmp.eq.s32.totalorder %s22, 0
      %p49 = por %p47, %p48
      %s51 = sadd.s32 %s50, 1
      %p54 = scmp.eq.s32.totalorder %s16, 1
      %p55 = scmp.ne.s32.totalorder %s50, %s52
      %p56 = scmp.eq.s32.totalorder %s16, 0
      %p57 = por %p55, %p56
      %p58 = scmp.ne.s32.totalorder %s50, %s52
      %p59 = scmp.eq.s32.totalorder %s21, 1
      %p60 = por %p58, %p59
      %p61 = scmp.ne.s32.totalorder %s52, %s53
      %p62 = scmp.eq.s32.totalorder %s21, 0
      %p63 = por %p61, %p62
      %p64 = scmp.ne.s32.totalorder %s52, %s53
      %p65 = scmp.eq.s32.totalorder %s22, 1
      %p66 = por %p64, %p65
      %p68 = scmp.ne.s32.totalorder %s53, %s67
      %p69 = scmp.eq.s32.totalorder %s22, 0
      %p70 = por %p68, %p69
      %s72 = sadd.s32 %s71, 1
      %p75 = scmp.eq.s32.totalorder %s16, 1
      %p76 = scmp.ne.s32.totalorder %s71, %s73
      %p77 = scmp.eq.s32.totalorder %s16, 0
      %p78 = por %p76, %p77
      %p79 = scmp.ne.s32.totalorder %s71, %s73
      %p80 = scmp.eq.s32.totalorder %s21, 1
      %p81 = por %p79, %p80
      %p82 = scmp.ne.s32.totalorder %s73, %s74
      %p83 = scmp.eq.s32.totalorder %s21, 0
      %p84 = por %p82, %p83
      %p85 = scmp.ne.s32.totalorder %s73, %s74
      %p86 = scmp.eq.s32.totalorder %s22, 1
      %p87 = por %p85, %p86
      %p89 = scmp.ne.s32.totalorder %s74, %s88
      %p90 = scmp.eq.s32.totalorder %s22, 0
      %p91 = por %p89, %p90
      %s93 = sadd.s32 %s92, 1
      %p96 = scmp.eq.s32.totalorder %s16, 1
      %p97 = scmp.ne.s32.totalorder %s92, %s94
      %p98 = scmp.eq.s32.totalorder %s16, 0
      %p99 = por %p97, %p98
      %p100 = scmp.ne.s32.totalorder %s92, %s94
      %p101 = scmp.eq.s32.totalorder %s21, 1
      %p102 = por %p100, %p101
      %p103 = scmp.ne.s32.totalorder %s94, %s95
      %p104 = scmp.eq.s32.totalorder %s21, 0
      %p105 = por %p103, %p104
      %p106 = scmp.ne.s32.totalorder %s94, %s95
      %p107 = scmp.eq.s32.totalorder %s22, 1
      %p108 = por %p106, %p107
      %p110 = scmp.ne.s32.totalorder %s95, %s109
      %p111 = scmp.eq.s32.totalorder %s22, 0
      %p112 = por %p110, %p111
      %s113 = ssub.s32 %s16, %s23
      %p114 = scmp.eq.s32.totalorder %s113, 0
      %s116 = sadd.s32 %s115, 1
      %s117 = scalar_select %p114, %s115, %s116
      %p120 = pneg %p114
      %p121 = scmp.eq.s32.totalorder %s16, 1
      %p122 = por %p120, %p121
      %p123 = scmp.ne.s32.totalorder %s115, %s118
      %p124 = scmp.eq.s32.totalorder %s16, 0
      %p125 = por %p123, %p124
      %p126 = scmp.ne.s32.totalorder %s115, %s118
      %p127 = scmp.eq.s32.totalorder %s21, 1
      %p128 = por %p126, %p127
      %p129 = scmp.ne.s32.totalorder %s118, %s119
      %p130 = scmp.eq.s32.totalorder %s21, 0
      %p131 = por %p129, %p130
      %p132 = scmp.ne.s32.totalorder %s118, %s119
      %p133 = scmp.eq.s32.totalorder %s22, 1
      %p134 = por %p132, %p133
      %p136 = scmp.ne.s32.totalorder %s119, %s135
      %p137 = scmp.eq.s32.totalorder %s22, 0
      %p138 = por %p136, %p137
      %s139 = ssub.s32 %s16, %s23
      %p140 = scmp.eq.s32.totalorder %s139, 0
      %s142 = sadd.s32 %s141, 1
      %s143 = scalar_select %p140, %s141, %s142
      %p146 = pneg %p140
      %p147 = scmp.eq.s32.totalorder %s16, 1
      %p148 = por %p146, %p147
      %p149 = scmp.ne.s32.totalorder %s141, %s144
      %p150 = scmp.eq.s32.totalorder %s16, 0
      %p151 = por %p149, %p150
      %p152 = scmp.ne.s32.totalorder %s141, %s144
      %p153 = scmp.eq.s32.totalorder %s21, 1
      %p154 = por %p152, %p153
      %p155 = scmp.ne.s32.totalorder %s144, %s145
      %p156 = scmp.eq.s32.totalorder %s21, 0
      %p157 = por %p155, %p156
      %p158 = scmp.ne.s32.totalorder %s144, %s145
      %p159 = scmp.eq.s32.totalorder %s22, 1
      %p160 = por %p158, %p159
      %p162 = scmp.ne.s32.totalorder %s145, %s161
      %p163 = scmp.eq.s32.totalorder %s22, 0
      %p164 = por %p162, %p163
      %s165 = ssub.s32 %s16, %s23
      %p166 = scmp.eq.s32.totalorder %s165, 0
      %s168 = sadd.s32 %s167, 1
      %s169 = scalar_select %p166, %s167, %s168
      %p172 = pneg %p166
      %p173 = scmp.eq.s32.totalorder %s16, 1
      %p174 = por %p172, %p173
      %p175 = scmp.ne.s32.totalorder %s167, %s170
      %p176 = scmp.eq.s32.totalorder %s16, 0
      %p177 = por %p175, %p176
      %p178 = scmp.ne.s32.totalorder %s167, %s170
      %p179 = scmp.eq.s32.totalorder %s21, 1
      %p180 = por %p178, %p179
      %p181 = scmp.ne.s32.totalorder %s170, %s171
      %p182 = scmp.eq.s32.totalorder %s21, 0
      %p183 = por %p181, %p182
      %p184 = scmp.ne.s32.totalorder %s170, %s171
      %p185 = scmp.eq.s32.totalorder %s22, 1
      %p186 = por %p184, %p185
      %p188 = scmp.ne.s32.totalorder %s171, %s187
      %p189 = scmp.eq.s32.totalorder %s22, 0
      %p190 = por %p188, %p189
      %p191 = scmp.le.s32.totalorder 1, %s16
      %p192 = scmp.lt.s32.totalorder %s16, 3
      %p193 = pnand %p191, %p192
      %p194 = pneg %p193
      // Predicated region
      $region9: #{tpu_custom_call.1} parent=5 // pred_check
        _
      $region10: #{tpu_custom_call.1} parent=5 // pred_check_branch
        %196 = sbr.rel (%p193) target = $region12
      $region11: #{tpu_custom_call.1} parent=5 // pred_region
        %s197 = ssub.s32 %s16, 1
        // Predicated region
        $region13: #{tpu_custom_call.1} parent=11 // pred_check
          %p198 = pneg %p63
        $region14: #{tpu_custom_call.1} parent=11 // pred_check_branch
          %200 = sbr.rel (%p198) target = $region16
        $region15: #{tpu_custom_call.1} parent=11 // pred_region
          _
        $region16: #{tpu_custom_call.1} parent=11 // pred_fallthru
          _
        // Predicated region
        $region17: #{tpu_custom_call.1} parent=11 // pred_check
          %p201 = pneg %p84
        $region18: #{tpu_custom_call.1} parent=11 // pred_check_branch
          %203 = sbr.rel (%p201) target = $region20
        $region19: #{tpu_custom_call.1} parent=11 // pred_region
          _
        $region20: #{tpu_custom_call.1} parent=11 // pred_fallthru
          _
        // Predicated region
        $region21: #{tpu_custom_call.1} parent=11 // pred_check
          %p204 = pneg %p105
        $region22: #{tpu_custom_call.1} parent=11 // pred_check_branch
          %206 = sbr.rel (%p204) target = $region24
        $region23: #{tpu_custom_call.1} parent=11 // pred_region
          _
        $region24: #{tpu_custom_call.1} parent=11 // pred_fallthru
          _
      $region12: #{tpu_custom_call.1} parent=5 // pred_fallthru
        _
      %p207 = scmp.lt.s32.totalorder %s16, 2
      // Predicated region
      $region25: #{tpu_custom_call.1} parent=5 // pred_check
        %p208 = pneg %p207
      $region26: #{tpu_custom_call.1} parent=5 // pred_check_branch
        %210 = sbr.rel (%p208) target = $region28
      $region27: #{tpu_custom_call.1} parent=5 // pred_region
        // Predicated region
        $region29: #{tpu_custom_call.1} parent=27 // pred_check
          %p211 = pneg %p36
        $region30: #{tpu_custom_call.1} parent=27 // pred_check_branch
          %213 = sbr.rel (%p211) target = $region32
        $region31: #{tpu_custom_call.1} parent=27 // pred_region
          %p214 = scmp.lt.s32.totalorder %s16, 1
          %s215 = scalar_select %p214, %s16, 1
          %s216 = smul.addr %s215, 8
          %s217 = scalar_lea.vmem %s0, %s216
        $region32: #{tpu_custom_call.1} parent=27 // pred_fallthru
          _
      $region28: #{tpu_custom_call.1} parent=5 // pred_fallthru
        _
      %p218 = scmp.le.s32.totalorder 1, %s16
      %p219 = scmp.lt.s32.totalorder %s16, 3
      %p220 = pnand %p218, %p219
      %p221 = pneg %p220
      // Predicated region
      $region33: #{tpu_custom_call.1} parent=5 // pred_check
        _
      $region34: #{tpu_custom_call.1} parent=5 // pred_check_branch
        %223 = sbr.rel (%p220) target = $region36
      $region35: #{tpu_custom_call.1} parent=5 // pred_region
        %s224 = ssub.s32 %s16, 1
        %p225 = scmp.lt.s32.totalorder %s21, 1
        %s226 = scalar_select %p225, %s21, 1
        %s227 = smul.addr %s226, 8
        %s228 = scalar_lea.vmem %s0, %s227
        %p229 = pneg %p42
        %p230 = pneg %p39
        %p231 = pneg %p63
        %p232 = pneg %p60
        %p233 = pneg %p84
        %p234 = pneg %p81
        %p235 = pneg %p105
        %p236 = pneg %p102
        %p237 = pneg %p131
        %p238 = pneg %p128
        %s239 = sand.u32 %s118, 1
        %s240 = scalar_lea.sflag [#allocation3], %s239
        %s241 = sand.u32 %s118, 1
        %s242 = smul.addr %s241, 4
        %s243 = scalar_lea.vmem [#allocation2], %s242
        %p244 = pneg %p157
        %p245 = pneg %p154
        %p246 = scmp.lt.s32.totalorder %s21, 1
        %s247 = scalar_select %p246, %s21, 1
        %s248 = smul.addr %s247, 8
        %s249 = scalar_lea.vmem %s5, %s248
        %p250 = pneg %p183
        %p251 = pneg %p180
        %p252 = scmp.lt.s32.totalorder %s21, 1
        %s253 = scalar_select %p252, %s21, 1
        %s254 = smul.addr %s253, 8
        %s255 = scalar_lea.vmem %s6, %s254
        %p256 = scmp.lt.s32.totalorder %s21, 1
        %s257 = scalar_select %p256, %s21, 1
        %s258 = smul.addr %s257, 8
        %s259 = scalar_lea.vmem %s0, %s258
        %p260 = scmp.lt.s32.totalorder %s21, 1
        %s261 = scalar_select %p260, %s21, 1
        %s262 = smul.addr %s261, 8
        %s263 = scalar_lea.vmem %s5, %s262
        %p264 = scmp.lt.s32.totalorder %s21, 1
        %s265 = scalar_select %p264, %s21, 1
        %s266 = smul.addr %s265, 8
        %s267 = scalar_lea.vmem %s6, %s266
        %v269 = vld [vmem:[%s259] sm:$0xff]
        %v270 = vpack.c.bf16 %v269, %v269
        %v271 = vld [vmem:[%s1] sm:$0xff]
        %v272 = vpack.c.bf16 %v271, %v271
        %vm273 = vcmask 64512
        %v275 = vsel %vm273, %v270, 0
        %vm277 = vcmask 1043456
        %v279 = vsel %vm277, %v272, 0
        %281 = vmatprep.subr.bf16.mxu0 0
        %282 = vmatpush1.bf16.msra.mxu0 %v279
        %283 = vmatprep.subr.bf16.mxu0 0
        %284 = vmatpush1.bf16.msra.mxu0 0
        %285 = vmatprep.subr.bf16.mxu0 0
        %286 = vmatpush1.bf16.msra.mxu0 0
        %287 = vmatprep.subr.bf16.mxu0 0
        %288 = vmatpush1.bf16.msra.mxu0 0
        %289 = vmatprep.subr.bf16.mxu0 0
        %290 = vmatpush1.bf16.msra.mxu0 0
        %291 = vmatprep.subr.bf16.mxu0 0
        %292 = vmatpush1.bf16.msra.mxu0 0
        %293 = vmatprep.subr.bf16.mxu0 0
        %294 = vmatpush1.bf16.msra.mxu0 0
        %295 = vmatprep.subr.bf16.mxu0 0
        %296 = vmatpush1.bf16.msra.mxu0 0
        %297 = vmatprep.subr.bf16.mxu0 0
        %298 = vmatpush1.bf16.msra.mxu0 0
        %299 = vmatprep.subr.bf16.mxu0 0
        %300 = vmatpush1.bf16.msra.mxu0 0
        %301 = vmatprep.subr.bf16.mxu0 0
        %302 = vmatpush1.bf16.msra.mxu0 0
        %303 = vmatprep.subr.bf16.mxu0 0
        %304 = vmatpush1.bf16.msra.mxu0 0
        %305 = vmatprep.subr.bf16.mxu0 0
        %306 = vmatpush1.bf16.msra.mxu0 0
        %307 = vmatprep.subr.bf16.mxu0 0
        %308 = vmatpush1.bf16.msra.mxu0 0
        %309 = vmatprep.subr.bf16.mxu0 0
        %310 = vmatpush1.bf16.msra.mxu0 0
        %311 = vmatprep.subr.bf16.mxu0 0
        %312 = vmatpush1.bf16.msra.mxu0 0
        %313 = vmatprep.mubr.bf16.mxu0 0
        %314 = vmatmul.mubr.bf16.gmra.mrb[0].mxu0 %v275
        %v315 = vpop.f32.mrb[0].mxu0
        %v316 = vadd.f32 0.0, %v315
        %v317 = vpop.f32.mrb[0].mxu0
        %v318 = vpop.f32.mrb[0].mxu0
        %v319 = vpop.f32.mrb[0].mxu0
        %320 = vdwg.mxu0
        %v321 = vpack.c.bf16 %v316, %v316
        %v322 = vld [vmem:[%s2] sm:$0xff]
        %v323 = vld [vmem:[%s2 + $0x8] sm:$0xff]
        %v324 = vld [vmem:[%s2 + $0x10] sm:$0xff]
        %v325 = vld [vmem:[%s2 + $0x18] sm:$0xff]
        %v326 = vld [vmem:[%s2 + $0x20] sm:$0xff]
        %v327 = vld [vmem:[%s2 + $0x28] sm:$0xff]
        %v328 = vld [vmem:[%s2 + $0x30] sm:$0xff]
        %v329 = vld [vmem:[%s2 + $0x38] sm:$0xff]
        %v330 = vpack.c.bf16 %v323, %v322
        %v331 = vpack.c.bf16 %v325, %v324
        %v332 = vpack.c.bf16 %v327, %v326
        %v333 = vpack.c.bf16 %v329, %v328
        %vm334 = vcmask 523264
        %v336 = vsel %vm334, %v321, 0
        %338 = vmatprep.subr.bf16.mxu0 0
        %339 = vmatpush1.bf16.msra.mxu0 %v330
        %340 = vmatprep.subr.bf16.mxu0 0
        %341 = vmatpush1.bf16.msra.mxu0 %v331
        %342 = vmatprep.subr.bf16.mxu0 0
        %343 = vmatpush1.bf16.msra.mxu0 %v332
        %344 = vmatprep.subr.bf16.mxu0 0
        %345 = vmatpush1.bf16.msra.mxu0 %v333
        %346 = vmatprep.subr.bf16.mxu0 0
        %347 = vmatpush1.bf16.msra.mxu0 0
        %348 = vmatprep.subr.bf16.mxu0 0
        %349 = vmatpush1.bf16.msra.mxu0 0
        %350 = vmatprep.subr.bf16.mxu0 0
        %351 = vmatpush1.bf16.msra.mxu0 0
        %352 = vmatprep.subr.bf16.mxu0 0
        %353 = vmatpush1.bf16.msra.mxu0 0
        %354 = vmatprep.subr.bf16.mxu0 0
        %355 = vmatpush1.bf16.msra.mxu0 0
        %356 = vmatprep.subr.bf16.mxu0 0
        %357 = vmatpush1.bf16.msra.mxu0 0
        %358 = vmatprep.subr.bf16.mxu0 0
        %359 = vmatpush1.bf16.msra.mxu0 0
        %360 = vmatprep.subr.bf16.mxu0 0
        %361 = vmatpush1.bf16.msra.mxu0 0
        %362 = vmatprep.subr.bf16.mxu0 0
        %363 = vmatpush1.bf16.msra.mxu0 0
        %364 = vmatprep.subr.bf16.mxu0 0
        %365 = vmatpush1.bf16.msra.mxu0 0
        %366 = vmatprep.subr.bf16.mxu0 0
        %367 = vmatpush1.bf16.msra.mxu0 0
        %368 = vmatprep.subr.bf16.mxu0 0
        %369 = vmatpush1.bf16.msra.mxu0 0
        %370 = vmatprep.mubr.bf16.mxu0 0
        %371 = vmatmul.mubr.bf16.gmra.mrb[0].mxu0 %v336
        %v372 = vpop.f32.mrb[0].mxu0
        %v373 = vadd.f32 0.0, %v372
        %v374 = vpop.f32.mrb[0].mxu0
        %v375 = vpop.f32.mrb[0].mxu0
        %v376 = vpop.f32.mrb[0].mxu0
        %377 = vdwg.mxu0
        %378 = vst.msk [vmem:[%s263] sm:$0xff] %vm273, %v373
        %v379 = vld [vmem:[%s3] sm:$0xff]
        %v380 = vld [vmem:[%s3 + $0x8] sm:$0xff]
        %v381 = vld [vmem:[%s3 + $0x10] sm:$0xff]
        %v382 = vld [vmem:[%s3 + $0x18] sm:$0xff]
        %v383 = vld [vmem:[%s3 + $0x20] sm:$0xff]
        %v384 = vld [vmem:[%s3 + $0x28] sm:$0xff]
        %v385 = vld [vmem:[%s3 + $0x30] sm:$0xff]
        %v386 = vld [vmem:[%s3 + $0x38] sm:$0xff]
        %v387 = vpack.c.bf16 %v380, %v379
        %v388 = vpack.c.bf16 %v382, %v381
        %v389 = vpack.c.bf16 %v384, %v383
        %v390 = vpack.c.bf16 %v386, %v385
        %391 = vmatprep.subr.bf16.mxu0 0
        %392 = vmatpush1.bf16.msra.mxu0 %v387
        %393 = vmatprep.subr.bf16.mxu0 0
        %394 = vmatpush1.bf16.msra.mxu0 %v388
        %395 = vmatprep.subr.bf16.mxu0 0
        %396 = vmatpush1.bf16.msra.mxu0 %v389
        %397 = vmatprep.subr.bf16.mxu0 0
        %398 = vmatpush1.bf16.msra.mxu0 %v390
        %399 = vmatprep.subr.bf16.mxu0 0
        %400 = vmatpush1.bf16.msra.mxu0 0
        %401 = vmatprep.subr.bf16.mxu0 0
        %402 = vmatpush1.bf16.msra.mxu0 0
        %403 = vmatprep.subr.bf16.mxu0 0
        %404 = vmatpush1.bf16.msra.mxu0 0
        %405 = vmatprep.subr.bf16.mxu0 0
        %406 = vmatpush1.bf16.msra.mxu0 0
        %407 = vmatprep.subr.bf16.mxu0 0
        %408 = vmatpush1.bf16.msra.mxu0 0
        %409 = vmatprep.subr.bf16.mxu0 0
        %410 = vmatpush1.bf16.msra.mxu0 0
        %411 = vmatprep.subr.bf16.mxu0 0
        %412 = vmatpush1.bf16.msra.mxu0 0
        %413 = vmatprep.subr.bf16.mxu0 0
        %414 = vmatpush1.bf16.msra.mxu0 0
        %415 = vmatprep.subr.bf16.mxu0 0
        %416 = vmatpush1.bf16.msra.mxu0 0
        %417 = vmatprep.subr.bf16.mxu0 0
        %418 = vmatpush1.bf16.msra.mxu0 0
        %419 = vmatprep.subr.bf16.mxu0 0
        %420 = vmatpush1.bf16.msra.mxu0 0
        %421 = vmatprep.subr.bf16.mxu0 0
        %422 = vmatpush1.bf16.msra.mxu0 0
        %423 = vmatprep.mubr.bf16.mxu0 0
        %424 = vmatmul.mubr.bf16.gmra.mrb[0].mxu0 %v336
        %v425 = vpop.f32.mrb[0].mxu0
        %v426 = vadd.f32 0.0, %v425
        %v427 = vpop.f32.mrb[0].mxu0
        %v428 = vpop.f32.mrb[0].mxu0
        %v429 = vpop.f32.mrb[0].mxu0
        %430 = vdwg.mxu0
        %431 = vst.msk [vmem:[%s267] sm:$0xff] %vm273, %v426
        %vm432 = vcmask 519168
        %433 = vst.msk [vmem:[%s243] sm:$0xf] %vm432, %v321
        %s434 = sand.u32 %s118, 1
        %s435 = scalar_lea.sflag [#allocation3], %s434
        %s436 = sand.u32 %s118, 1
        %s437 = smul.addr %s436, 4
        %s438 = scalar_lea.vmem [#allocation2], %s437
        %p439 = scmp.lt.s32.totalorder %s21, 1
        %s440 = scalar_select %p439, %s21, 1
        %s441 = smul.addr %s440, 8
        %s442 = scalar_lea.vmem %s5, %s441
        %p443 = scmp.lt.s32.totalorder %s21, 1
        %s444 = scalar_select %p443, %s21, 1
        %s445 = smul.addr %s444, 8
        %s446 = scalar_lea.vmem %s6, %s445
        // Predicated region
        $region37: #{tpu_custom_call.1} parent=35 // pred_check
          %p447 = pneg %p128
        $region38: #{tpu_custom_call.1} parent=35 // pred_check_branch
          %449 = sbr.rel (%p447) target = $region40
        $region39: #{tpu_custom_call.1} parent=35 // pred_region
          %s451 = ssub.s32 64, 64
          %452 = vsyncadd %s435, %s451
          %s453 = smul.addr %s21, 64
          %s454 = scalar_lea.hbm %s4, %s453
          %s456 = sshll.u32 %s438, 4
          %s457 = int_to_ptr.vmem [resolvable:$true] %s456
          %459 = dma.vmem_to_hbm [thread:$0]  %s457, 64, %s454, %s435
        $region40: #{tpu_custom_call.1} parent=35 // pred_fallthru
          _
        // Predicated region
        $region41: #{tpu_custom_call.1} parent=35 // pred_check
          %p460 = pneg %p154
        $region42: #{tpu_custom_call.1} parent=35 // pred_check_branch
          %462 = sbr.rel (%p460) target = $region44
        $region43: #{tpu_custom_call.1} parent=35 // pred_region
          _
        $region44: #{tpu_custom_call.1} parent=35 // pred_fallthru
          _
        // Predicated region
        $region45: #{tpu_custom_call.1} parent=35 // pred_check
          %p463 = pneg %p180
        $region46: #{tpu_custom_call.1} parent=35 // pred_check_branch
          %465 = sbr.rel (%p463) target = $region48
        $region47: #{tpu_custom_call.1} parent=35 // pred_region
          _
        $region48: #{tpu_custom_call.1} parent=35 // pred_fallthru
          _
      $region36: #{tpu_custom_call.1} parent=5 // pred_fallthru
        _
      %p466 = scmp.le.s32.totalorder 2, %s16
      // Predicated region
      $region49: #{tpu_custom_call.1} parent=5 // pred_check
        %p467 = pneg %p466
      $region50: #{tpu_custom_call.1} parent=5 // pred_check_branch
        %469 = sbr.rel (%p467) target = $region52
      $region51: #{tpu_custom_call.1} parent=5 // pred_region
        %s470 = ssub.s32 %s16, 2
        // Predicated region
        $region53: #{tpu_custom_call.1} parent=51 // pred_check
          %p471 = pneg %p134
        $region54: #{tpu_custom_call.1} parent=51 // pred_check_branch
          %473 = sbr.rel (%p471) target = $region56
        $region55: #{tpu_custom_call.1} parent=51 // pred_region
          %s474 = sand.u32 %s119, 1
          %s475 = scalar_lea.sflag [#allocation3], %s474
          %s476 = sand.u32 %s119, 1
          %s477 = smul.addr %s476, 4
          %s478 = scalar_lea.vmem [#allocation2], %s477
          %479 = dma.done %s475, 64
        $region56: #{tpu_custom_call.1} parent=51 // pred_fallthru
          _
        // Predicated region
        $region57: #{tpu_custom_call.1} parent=51 // pred_check
          %p480 = pneg %p160
        $region58: #{tpu_custom_call.1} parent=51 // pred_check_branch
          %482 = sbr.rel (%p480) target = $region60
        $region59: #{tpu_custom_call.1} parent=51 // pred_region
          %p483 = scmp.lt.s32.totalorder %s22, 1
          %s484 = scalar_select %p483, %s22, 1
          %s485 = smul.addr %s484, 8
          %s486 = scalar_lea.vmem %s5, %s485
        $region60: #{tpu_custom_call.1} parent=51 // pred_fallthru
          _
        // Predicated region
        $region61: #{tpu_custom_call.1} parent=51 // pred_check
          %p487 = pneg %p186
        $region62: #{tpu_custom_call.1} parent=51 // pred_check_branch
          %489 = sbr.rel (%p487) target = $region64
        $region63: #{tpu_custom_call.1} parent=51 // pred_region
          %p490 = scmp.lt.s32.totalorder %s22, 1
          %s491 = scalar_select %p490, %s22, 1
          %s492 = smul.addr %s491, 8
          %s493 = scalar_lea.vmem %s6, %s492
        $region64: #{tpu_custom_call.1} parent=51 // pred_fallthru
          _
      $region52: #{tpu_custom_call.1} parent=5 // pred_fallthru
        _
    $region6: #{tpu_custom_call.1} parent=1 // loop_footer
      %s20 = sadd.s32 1, %s16
    $region7: #{tpu_custom_call.1} parent=1 // loop_footer_branch
      %15 = sbr.rel target = $region3
    $region8: #{tpu_custom_call.1} parent=1 // loop_exit
      _
    %494 = vsyncpa [#allocation3], 1
    %s495 = scalar_lea.sflag [#allocation3], 1
    %496 = vsyncpa %s495, 1

</llo_original>
